<compile_context>
chip_gen: v6e
topology: v6e:2x2x1
jax: 0.10.0
libtpu: 0.0.40
codegen_flags: <defaults>
</compile_context>

<pallas_src>
import math

import jax
import jax.numpy as jnp
from jax.experimental import pallas as pl
from jax.experimental.pallas import tpu as pltpu


def _dytanh_kernel(x_ref, params_ref, o_ref):
    x = x_ref[...].astype(jnp.float32)               # (TM, TH)
    scale = params_ref[0:1, :].astype(jnp.float32)   # (1, TH) -> broadcast over rows
    shift = params_ref[1:2, :].astype(jnp.float32)
    alpha = params_ref[2:3, :].astype(jnp.float32)
    o_ref[...] = (scale * jnp.tanh(alpha * x) + shift).astype(o_ref.dtype)


def _device_kind():
    try:
        return jax.devices()[0].device_kind.lower()
    except Exception:
        return ""


def _is_v7x():
    return "v7" in _device_kind()


def _block_budget_bytes():
    # v7x: ~3.2 TB/s HBM but the ~0.35us per-grid-step overhead is unchanged,
    # so use bigger blocks there.  v5e/v6e: 4 MiB blocks already sit at the
    # roofline knee (measured ~85% of HBM BW at 512-row-class f32 tiles).
    return (8 << 20) if _is_v7x() else (4 << 20)


def _fold_factor(M, H):
    """Rows folded into lanes so the lane dim becomes a multiple of 128."""
    if H % 128 == 0:
        return 1
    k = 128 // math.gcd(H, 128)
    if k > 1 and M % k == 0:
        return k
    return 1  # fallback: keep full-H blocks (masked stores, still correct)


def _choose_tiles(M, H, itemsize):
    """Pick (tile_rows, tile_h): sublane/lane-aligned, VMEM-budgeted, megacore-aware."""
    budget = _block_budget_bytes()

    # Block H only when a single 8-row stripe of the full H already busts the budget.
    if H % 128 == 0 and 8 * H * itemsize > budget:
        tile_h = max(128, (budget // (8 * itemsize)) // 128 * 128)
        tile_h = min(tile_h, H)
    else:
        tile_h = H  # full extent (allowed even when not a 128 multiple)

    rows_by_vmem = max(8, (budget // max(1, tile_h * itemsize)) // 8 * 8)
    rows_total = max(8, pl.cdiv(M, 8) * 8)
    tile_rows = min(rows_by_vmem, rows_total)

    # v7x megacore: prefer an even row-grid with >=2 steps per TensorCore so the
    # two cores get balanced work and input prefetch overlaps output writeback.
    if _is_v7x() and M >= 4 * 8:
        rows_for_4_steps = max(8, pl.cdiv(pl.cdiv(M, 4), 8) * 8)
        tile_rows = min(tile_rows, rows_for_4_steps)
        gm = pl.cdiv(M, tile_rows)
        if gm > 1 and gm % 2:
            tile_rows = max(8, pl.cdiv(pl.cdiv(M, gm + 1), 8) * 8)

    return tile_rows, tile_h


def dytanh(x, scale, shift, alpha, *, donate_x=False):
    """x: (..., H); scale/shift/alpha: (H,). Returns same shape/dtype as x."""
    orig_shape = x.shape
    H = orig_shape[-1]
    M = 1
    for d in orig_shape[:-1]:
        M *= d

    # Pack the three (H,) params into one (3, H) resident block.
    params = jnp.stack(
        [scale.reshape(H), shift.reshape(H), alpha.reshape(H)], axis=0)

    # Fold rows into lanes so the lane dim is a multiple of 128 when possible.
    k = _fold_factor(M, H)
    M_l, H_l = M // k, H * k
    x2 = x.reshape(M_l, H_l)
    params_l = jnp.tile(params, (1, k)) if k > 1 else params  # (3, H_l), tiny

    itemsize = jnp.dtype(x.dtype).itemsize
    tile_rows, tile_h = _choose_tiles(M_l, H_l, itemsize)
    grid = (pl.cdiv(M_l, tile_rows), pl.cdiv(H_l, tile_h))

    compiler_params = pltpu.CompilerParams(
        dimension_semantics=("parallel", "parallel"),
        vmem_limit_bytes=(48 << 20) if _is_v7x() else None,
    )

    out2 = pl.pallas_call(
        _dytanh_kernel,
        out_shape=jax.ShapeDtypeStruct((M_l, H_l), x.dtype),
        grid_spec=pltpu.PrefetchScalarGridSpec(
            num_scalar_prefetch=0,
            grid=grid,
            in_specs=[
                pl.BlockSpec((tile_rows, tile_h), lambda i, j: (i, j)),  # x tile
                pl.BlockSpec((3, tile_h), lambda i, j: (0, j)),          # packed params (resident over rows)
            ],
            out_specs=pl.BlockSpec((tile_rows, tile_h), lambda i, j: (i, j)),
        ),
        compiler_params=compiler_params,
        input_output_aliases=({0: 0} if donate_x else {}),
    )(x2, params_l)

    return out2.reshape(orig_shape)


if __name__ == "__main__":
    key = jax.random.PRNGKey(0)
    kx, ks, kh, ka = jax.random.split(key, 4)

    def make_params(H):
        mean, std = 0.1, 0.001  # mirrors torch.randn(shape) * std + mean
        s = jax.random.normal(ks, (H,), jnp.float32) * std + mean
        h = jax.random.normal(kh, (H,), jnp.float32) * std + mean
        a = jax.random.normal(ka, (H,), jnp.float32) * std + mean
        return s, h, a

    def ref_fn(x, scale, shift, alpha):
        return scale * jnp.tanh(alpha * x) + shift

    # Case 1: small lane-aligned shape (B, S, H) = (2, 8, 128).
    B, S, H = 2, 8, 128
    scale, shift, alpha = make_params(H)
    x = jax.random.normal(kx, (B, S, H), jnp.float32)
    out = dytanh(x, scale, shift, alpha)
    jax.block_until_ready(out)
    assert out.shape == x.shape and out.dtype == x.dtype
    assert jnp.allclose(out, ref_fn(x, scale, shift, alpha), atol=1e-6, rtol=1e-6)

    # Case 2: non-tile-divisible row count, H a multiple of 128 (no host pad/slice).
    x_big = jax.random.normal(kx, (3, 1000, H), jnp.float32)
    out_big = dytanh(x_big, scale, shift, alpha)
    jax.block_until_ready(out_big)
    assert jnp.allclose(out_big, ref_fn(x_big, scale, shift, alpha),
                        atol=1e-6, rtol=1e-6)

    # Case 3: small non-128 H -> rows folded into lanes (H=32, k=4 -> lane dim 128).
    H3 = 32
    scale3, shift3, alpha3 = make_params(H3)
    x3 = jax.random.normal(kx, (2, 8, H3), jnp.float32)
    out3 = dytanh(x3, scale3, shift3, alpha3)
    jax.block_until_ready(out3)
    assert jnp.allclose(out3, ref_fn(x3, scale3, shift3, alpha3),
                        atol=1e-6, rtol=1e-6)

    # Case 4: bf16 I/O (kernel upcasts to f32 internally).
    xb = jax.random.normal(kx, (2, 8, H), jnp.float32).astype(jnp.bfloat16)
    outb = dytanh(xb, scale, shift, alpha)
    jax.block_until_ready(outb)
    refb = ref_fn(xb.astype(jnp.float32), scale, shift, alpha).astype(jnp.bfloat16)
    assert outb.dtype == jnp.bfloat16
    assert jnp.allclose(outb.astype(jnp.float32), refb.astype(jnp.float32),
                        atol=2e-2, rtol=2e-2)

    print("KERNEL_OK")
</pallas_src>

<mosaic_0001>
module attributes {stable_mosaic.version = 11 : i64} {
  func.func @_dytanh_kernel(%arg0: i32, %arg1: i32, %arg2: memref<16x128xf32, #tpu.memory_space<vmem>>, %arg3: memref<3x128xf32, #tpu.memory_space<vmem>>, %arg4: memref<16x128xf32, #tpu.memory_space<vmem>>) attributes {dimension_semantics = [#tpu.dimension_semantics<parallel>, #tpu.dimension_semantics<parallel>], iteration_bounds = array<i64: 1, 1>, scalar_prefetch = 0 : i64, scratch_operands = 0 : i64, tpu.core_type = #tpu.core_type<tc>, window_params = [{transform_indices = @transform_0, window_bounds = array<i64: 16, 128>}, {transform_indices = @transform_1, window_bounds = array<i64: 3, 128>}, {transform_indices = @transform_2, window_bounds = array<i64: 16, 128>}]} {
    %c0 = arith.constant 0 : index
    %c0_0 = arith.constant 0 : index
    %0 = vector.load %arg2[%c0, %c0_0] : memref<16x128xf32, #tpu.memory_space<vmem>>, vector<16x128xf32>
    %c0_1 = arith.constant 0 : index
    %c0_2 = arith.constant 0 : index
    %1 = vector.load %arg3[%c0_1, %c0_2] : memref<3x128xf32, #tpu.memory_space<vmem>>, vector<1x128xf32>
    %c1 = arith.constant 1 : index
    %c0_3 = arith.constant 0 : index
    %2 = vector.load %arg3[%c1, %c0_3] : memref<3x128xf32, #tpu.memory_space<vmem>>, vector<1x128xf32>
    %c2 = arith.constant 2 : index
    %c0_4 = arith.constant 0 : index
    %3 = vector.load %arg3[%c2, %c0_4] : memref<3x128xf32, #tpu.memory_space<vmem>>, vector<1x128xf32>
    %4 = vector.broadcast %3 : vector<1x128xf32> to vector<16x128xf32>
    %5 = arith.mulf %4, %0 : vector<16x128xf32>
    %6 = math.tanh %5 : vector<16x128xf32>
    %7 = vector.broadcast %1 : vector<1x128xf32> to vector<16x128xf32>
    %8 = arith.mulf %7, %6 : vector<16x128xf32>
    %9 = vector.broadcast %2 : vector<1x128xf32> to vector<16x128xf32>
    %10 = arith.addf %8, %9 : vector<16x128xf32>
    %c0_5 = arith.constant 0 : index
    %c0_6 = arith.constant 0 : index
    %11 = vector.load %arg4[%c0_5, %c0_6] : memref<16x128xf32, #tpu.memory_space<vmem>>, vector<16x128xf32>
    tpu.vector_store %arg4[%c0_5, %c0_6], %10 {strides = array<i32>} : memref<16x128xf32, #tpu.memory_space<vmem>>, vector<16x128xf32>,
    return
  }
  func.func @transform_0(%arg0: i32, %arg1: i32) -> (i32, i32) {
    %c0_i32 = arith.constant 0 : i32
    return %arg0, %arg1 : i32, i32
  }
  func.func @transform_1(%arg0: i32, %arg1: i32) -> (i32, i32) {
    %c0_i32 = arith.constant 0 : i32
    %c0_i32_0 = arith.constant 0 : i32
    return %c0_i32, %arg1 : i32, i32
  }
  func.func @transform_2(%arg0: i32, %arg1: i32) -> (i32, i32) {
    %c0_i32 = arith.constant 0 : i32
    return %arg0, %arg1 : i32, i32
  }
}

</mosaic_0001>

<llo_original>
// kernel: tpu_custom_call.1
$region0: #{tpu_custom_call.1}
  #allocation0 [shape = 'u32[]', space=smem, size = 0x4, offset = 0x4, fixed_abs, tag = 'smem constant byte address 0x4 - core index']
  #allocation1 [shape = 'u32[144,128]{1,0:T(1,128)}', space=vmem, size = 0x12000, scoped, tag = 'internal scratch']
  %s0 = inlined_call_operand.hbm [shape: f32[16,128], index: 0, kind: input, shape index: {}]
  %s1 = inlined_call_operand.hbm [shape: f32[3,128], index: 1, kind: input, shape index: {}]
  %s2 = inlined_call_operand.hbm [shape: f32[16,128], index: 2, kind: output, shape index: {}]
  %s3 = sld [smem:[#allocation0]]
  $region26: #{tpu_custom_call.1} parent=0
    _
  %s5 = ssub.s32 1, %s3
  %s6 = scalar_select 0, %s5, %s3
  $region1: #{tpu_custom_call.1} parent=0
    #allocation2 [shape = 'u8[8192]{0}', space=vmem, size = 0x2000, scoped, tag = 'input window, operand 0, single buffered']
    #allocation3 [shape = 's32[1]{0}', space=sflag, size = 0x4, scoped, tag = 'scoped memory for tpu_custom_call.1']
    #allocation4 [shape = 's32[1]{0}', space=sflag, size = 0x4, scoped, tag = 'scoped memory for tpu_custom_call.1']
    #allocation5 [shape = 'u8[2048]{0}', space=vmem, size = 0x800, scoped, tag = 'input window, operand 1, single buffered']
    #allocation6 [shape = 's32[1]{0}', space=sflag, size = 0x4, scoped, tag = 'scoped memory for tpu_custom_call.1']
    #allocation7 [shape = 'u8[8192]{0}', space=vmem, size = 0x2000, scoped, tag = 'output window, operand 0, single buffered']
    %7 = vsyncpa [#allocation3], 0
    %8 = vsyncpa [#allocation6], 0
    %9 = vsyncpa [#allocation4], 0
    // Predicated region
    $region2: #{tpu_custom_call.1} parent=1 // pred_check
      _
    $region3: #{tpu_custom_call.1} parent=1 // pred_check_branch
      %11 = sbr.rel (0) target = $region5
    $region4: #{tpu_custom_call.1} parent=1 // pred_region
      %s13 = ssub.s32 256, 256
      %14 = vsyncadd [#allocation3], %s13
      %s15 = sshll.u32 [#allocation2], 4
      %s16 = int_to_ptr.vmem [resolvable:$true] %s15
      %21 = dma.hbm_to_vmem [thread:$0]  %s0, 256, %s16, [#allocation3], 128, 128, 8
    $region5: #{tpu_custom_call.1} parent=1 // pred_fallthru
      _
    // Predicated region
    $region6: #{tpu_custom_call.1} parent=1 // pred_check
      _
    $region7: #{tpu_custom_call.1} parent=1 // pred_check_branch
      %23 = sbr.rel (0) target = $region9
    $region8: #{tpu_custom_call.1} parent=1 // pred_region
      %s25 = ssub.s32 64, 64
      %26 = vsyncadd [#allocation6], %s25
      %s28 = sshll.u32 [#allocation5], 4
      %s29 = int_to_ptr.vmem [resolvable:$true] %s28
      %31 = dma.hbm_to_vmem [thread:$0]  %s1, 64, %s29, [#allocation6]
    $region9: #{tpu_custom_call.1} parent=1 // pred_fallthru
      _
    // Predicated region
    $region10: #{tpu_custom_call.1} parent=1 // pred_check
      _
    $region11: #{tpu_custom_call.1} parent=1 // pred_check_branch
      %33 = sbr.rel (0) target = $region13
    $region12: #{tpu_custom_call.1} parent=1 // pred_region
      %34 = dma.done [#allocation3], 256
    $region13: #{tpu_custom_call.1} parent=1 // pred_fallthru
      _
    // Predicated region
    $region14: #{tpu_custom_call.1} parent=1 // pred_check
      _
    $region15: #{tpu_custom_call.1} parent=1 // pred_check_branch
      %36 = sbr.rel (0) target = $region17
    $region16: #{tpu_custom_call.1} parent=1 // pred_region
      %37 = dma.done [#allocation6], 64
    $region17: #{tpu_custom_call.1} parent=1 // pred_fallthru
      _
    %v38 = vld [vmem:[#allocation2] sm:$0xff]
    %v39 = vld [vmem:[#allocation2 + $0x8] sm:$0xff]
    %v40 = vld [vmem:[#allocation5] sm:$0x1]
    %v41 = vld [vmem:[#allocation5 + $0x1] sm:$0x1]
    %v42 = vld [vmem:[#allocation5 + $0x2] sm:$0x1]
    %v43 = vlaneseq
    %v44 = vshrl.u32 %v43, 7
    %v45 = vsub.s32 0, %v44
    %v46 = vrot.slane %v42, %v45
    %v47 = vmul.f32 %v46, %v38
    %v48 = vmul.f32 %v46, %v39
    %v49 = vtanh.pop %v47
    %v50 = vtanh.pop %v48
    %v51 = vlaneseq
    %v52 = vshrl.u32 %v51, 7
    %v53 = vsub.s32 0, %v52
    %v54 = vrot.slane %v40, %v53
    %v55 = vmul.f32 %v54, %v49
    %v56 = vmul.f32 %v54, %v50
    %v57 = vlaneseq
    %v58 = vshrl.u32 %v57, 7
    %v59 = vsub.s32 0, %v58
    %v60 = vrot.slane %v41, %v59
    %v61 = vadd.f32 %v55, %v60
    %v62 = vadd.f32 %v56, %v60
    %63 = vst [vmem:[#allocation7] sm:$0xff] %v61
    %64 = vst [vmem:[#allocation7 + $0x8] sm:$0xff] %v62
    // Predicated region
    $region18: #{tpu_custom_call.1} parent=1 // pred_check
      _
    $region19: #{tpu_custom_call.1} parent=1 // pred_check_branch
      %66 = sbr.rel (0) target = $region21
    $region20: #{tpu_custom_call.1} parent=1 // pred_region
      %s68 = ssub.s32 256, 256
      %69 = vsyncadd [#allocation4], %s68
      %s70 = sshll.u32 [#allocation7], 4
      %s71 = int_to_ptr.vmem [resolvable:$true] %s70
      %76 = dma.vmem_to_hbm [thread:$0]  %s71, 256, %s2, [#allocation4], 128, 128, 8
    $region21: #{tpu_custom_call.1} parent=1 // pred_fallthru
      _
    // Predicated region
    $region22: #{tpu_custom_call.1} parent=1 // pred_check
      _
    $region23: #{tpu_custom_call.1} parent=1 // pred_check_branch
      %78 = sbr.rel (0) target = $region25
    $region24: #{tpu_custom_call.1} parent=1 // pred_region
      %79 = dma.done [#allocation4], 256
    $region25: #{tpu_custom_call.1} parent=1 // pred_fallthru
      _
    %80 = vsyncpa [#allocation3], 1
    %81 = vsyncpa [#allocation6], 1
    %82 = vsyncpa [#allocation4], 1

</llo_original>
